<compile_context>
chip_gen: v5e
topology: v5e:2x2
jax: 0.10.0
libtpu: 0.0.40
codegen_flags: <defaults>
</compile_context>

<pallas_src>
import jax
import jax.numpy as jnp
from jax.experimental import pallas as pl
from jax.experimental.pallas import tpu as pltpu

_LANE = 128
_SUBLANE = 8
_TARGET_BLOCK_BYTES = 1 << 20  # ~1 MiB per (x0 | x1 | out) block


def _mixup_image_kernel(perm_ref, lbda_ref, x0_ref, x1_ref, xo_ref):
    # perm_ref: scalar-prefetch SMEM int32[B]; only consumed by the x1
    #           index_map in the gather variant (unused in the body).
    # lbda_ref: SMEM float32[1] mixing coefficient.
    del perm_ref
    lbda = lbda_ref[0]
    x0 = x0_ref[...].astype(jnp.float32)
    x1 = x1_ref[...].astype(jnp.float32)
    xo_ref[...] = (lbda * x0 + (1.0 - lbda) * x1).astype(xo_ref.dtype)


def _largest_divisor(n, pred):
    """Largest divisor d of n with pred(d); falls back to 1."""
    best = 1
    for d in range(1, n + 1):
        if n % d == 0 and pred(d):
            best = d
    return best


def mixup_pallas(x0, l0, x1, l1, lbda, perm):
    """x0/x1: (B, C, H, W); l0/l1: (B, L); lbda: scalar f32; perm: (B,) int32."""
    B, C, H, W = x0.shape
    D = C * H * W
    lbda = jnp.asarray(lbda, jnp.float32)
    perm = perm.astype(jnp.int32)

    # ---- Labels: tiny (B*L*4 bytes). Mixed in plain JAX per the review so the
    # per-step grid does not pay 2 extra DMAs + a masked vst every iteration.
    mixed_l = lbda * l0 + (1.0 - lbda) * jnp.take(l1, perm, axis=0)

    # ---- Images: reshape to lane/sublane-dense (B, S, 128), S multiple of 8.
    pad_to = _SUBLANE * _LANE  # 1024
    d_pad = ((D + pad_to - 1) // pad_to) * pad_to
    S = d_pad // _LANE

    def to_tiles(x):
        x = x.reshape(B, D)
        if d_pad != D:
            x = jnp.pad(x, ((0, 0), (0, d_pad - D)))
        return x.reshape(B, S, _LANE)

    x0_t = to_tiles(x0)
    x1_t = to_tiles(x1)

    itemsize = jnp.dtype(x0.dtype).itemsize
    bytes_per_sample = S * _LANE * itemsize

    # Batch TB samples per grid step while TB * sample <= ~1 MiB (amortizes the
    # ~0.35us/step overhead; keeps double-buffered x0/x1/out blocks ~<=6 MiB
    # total, far under the 32 MiB scoped-VMEM default on all generations).
    TB = _largest_divisor(B, lambda d: d * bytes_per_sample <= _TARGET_BLOCK_BYTES)
    # Tile the feature axis when a single sample is already large.
    TS = _largest_divisor(
        S,
        lambda d: (d % _SUBLANE == 0 or d == S)
        and TB * d * _LANE * itemsize <= _TARGET_BLOCK_BYTES)
    if TS % _SUBLANE != 0 and TS != S:
        TS = S  # safety net; S is always a multiple of 8 after padding

    grid = (B // TB, S // TS)

    if TB == 1:
        # Large samples: gather x1[perm] for free through the scalar-prefetched
        # index_map -- no extra HBM pass over x1.
        x1_in = x1_t
        x1_index_map = lambda i, j, perm_ref: (perm_ref[i], j, 0)
    else:
        # Small samples: pre-gather once in XLA so TB permuted samples form one
        # contiguous, auto-pipelined block per grid step.
        x1_in = jnp.take(x1_t, perm, axis=0)
        x1_index_map = lambda i, j, perm_ref: (i, j, 0)

    grid_spec = pltpu.PrefetchScalarGridSpec(
        num_scalar_prefetch=1,  # perm -> SMEM, visible to index_maps
        grid=grid,
        in_specs=[
            pl.BlockSpec(memory_space=pltpu.MemorySpace.SMEM),             # lbda
            pl.BlockSpec((TB, TS, _LANE), lambda i, j, perm_ref: (i, j, 0)),  # x0
            pl.BlockSpec((TB, TS, _LANE), x1_index_map),                      # x1[perm]
        ],
        out_specs=pl.BlockSpec((TB, TS, _LANE), lambda i, j, perm_ref: (i, j, 0)),
    )

    mixed_x_t = pl.pallas_call(
        _mixup_image_kernel,
        grid_spec=grid_spec,
        out_shape=jax.ShapeDtypeStruct((B, S, _LANE), x0.dtype),
        compiler_params=pltpu.CompilerParams(
            dimension_semantics=("parallel", "parallel")),
    )(perm, lbda.reshape(1), x0_t, x1_in)

    mixed_x = mixed_x_t.reshape(B, d_pad)[:, :D].reshape(B, C, H, W)
    return mixed_x, mixed_l


def mixup_forward(x0, l0, x1, l1, *, alpha=0.75, fav_src=False, key):
    """Replicates Mixup.forward / mix_pair: lbda ~ Beta(alpha, alpha),
    index = randperm(B), then the interpolation (Pallas for images)."""
    k_beta, k_perm = jax.random.split(key)
    lbda = jax.random.beta(k_beta, alpha, alpha)
    if fav_src:
        lbda = jnp.maximum(lbda, 1.0 - lbda)
    perm = jax.random.permutation(k_perm, x0.shape[0]).astype(jnp.int32)
    return mixup_pallas(x0, l0, x1, l1, lbda, perm), lbda, perm


def _check(B, C, H, W, L, *, fav_src, key):
    kx0, kl0, kx1, kl1, kmix = jax.random.split(key, 5)
    x0 = jax.random.normal(kx0, (B, C, H, W), jnp.float32)
    x1 = jax.random.normal(kx1, (B, C, H, W), jnp.float32)
    l0 = jax.random.uniform(kl0, (B, L), jnp.float32)
    l1 = jax.random.uniform(kl1, (B, L), jnp.float32)

    (mixed_x, mixed_l), lbda, perm = mixup_forward(
        x0, l0, x1, l1, alpha=0.75, fav_src=fav_src, key=kmix)
    jax.block_until_ready((mixed_x, mixed_l))

    ref_x = lbda * x0 + (1.0 - lbda) * x1[perm]
    ref_l = lbda * l0 + (1.0 - lbda) * l1[perm]
    assert mixed_x.shape == (B, C, H, W) and mixed_l.shape == (B, L)
    assert jnp.allclose(mixed_x, ref_x, atol=1e-6, rtol=1e-6)
    assert jnp.allclose(mixed_l, ref_l, atol=1e-6, rtol=1e-6)


if __name__ == "__main__":
    key = jax.random.PRNGKey(0)
    k1, k2 = jax.random.split(key)

    # Main case: D = 4*16*16 = 1024 (exactly one dense (8,128) sample tile).
    _check(4, 4, 16, 16, 8, fav_src=False, key=k1)
    # Padding / fav_src case: D = 3*10*10 = 300 -> padded to 1024 lanes.
    _check(2, 3, 10, 10, 5, fav_src=True, key=k2)

    print("KERNEL_OK")
</pallas_src>

<mosaic_0001>
module attributes {stable_mosaic.version = 11 : i64} {
  func.func @_mixup_image_kernel(%arg0: i32, %arg1: i32, %arg2: memref<4xi32, #tpu.memory_space<smem>>, %arg3: memref<1xf32, #tpu.memory_space<smem>>, %arg4: memref<4x8x128xf32, #tpu.memory_space<vmem>>, %arg5: memref<4x8x128xf32, #tpu.memory_space<vmem>>, %arg6: memref<4x8x128xf32, #tpu.memory_space<vmem>>) attributes {dimension_semantics = [#tpu.dimension_semantics<parallel>, #tpu.dimension_semantics<parallel>], iteration_bounds = array<i64: 1, 1>, scalar_prefetch = 1 : i64, scratch_operands = 0 : i64, tpu.core_type = #tpu.core_type<tc>, window_params = [{transform_indices = @transform_0, window_bounds = array<i64: 1>}, {transform_indices = @transform_1, window_bounds = array<i64: 4, 8, 128>}, {transform_indices = @transform_2, window_bounds = array<i64: 4, 8, 128>}, {transform_indices = @transform_3, window_bounds = array<i64: 4, 8, 128>}]} {
    %c0 = arith.constant 0 : index
    %0 = memref.load %arg3[%c0] : memref<1xf32, #tpu.memory_space<smem>>
    %c0_0 = arith.constant 0 : index
    %c0_1 = arith.constant 0 : index
    %c0_2 = arith.constant 0 : index
    %1 = vector.load %arg4[%c0_0, %c0_1, %c0_2] : memref<4x8x128xf32, #tpu.memory_space<vmem>>, vector<4x8x128xf32>
    %c0_3 = arith.constant 0 : index
    %c0_4 = arith.constant 0 : index
    %c0_5 = arith.constant 0 : index
    %2 = vector.load %arg5[%c0_3, %c0_4, %c0_5] : memref<4x8x128xf32, #tpu.memory_space<vmem>>, vector<4x8x128xf32>
    %3 = vector.broadcast %0 : f32 to vector<4x8x128xf32>
    %4 = arith.mulf %3, %1 : vector<4x8x128xf32>
    %cst = arith.constant 1.000000e+00 : f32
    %5 = arith.subf %cst, %0 : f32
    %6 = vector.broadcast %5 : f32 to vector<4x8x128xf32>
    %7 = arith.mulf %6, %2 : vector<4x8x128xf32>
    %8 = arith.addf %4, %7 : vector<4x8x128xf32>
    %c0_6 = arith.constant 0 : index
    %c0_7 = arith.constant 0 : index
    %c0_8 = arith.constant 0 : index
    %9 = vector.load %arg6[%c0_6, %c0_7, %c0_8] : memref<4x8x128xf32, #tpu.memory_space<vmem>>, vector<4x8x128xf32>
    tpu.vector_store %arg6[%c0_6, %c0_7, %c0_8], %8 {strides = array<i32>} : memref<4x8x128xf32, #tpu.memory_space<vmem>>, vector<4x8x128xf32>,
    return
  }
  func.func @transform_0(%arg0: i32, %arg1: i32, %arg2: memref<4xi32, #tpu.memory_space<smem>>) -> i32 {
    %c0_i32 = arith.constant 0 : i32
    %c0_i32_0 = arith.constant 0 : i32
    return %c0_i32 : i32
  }
  func.func @transform_1(%arg0: i32, %arg1: i32, %arg2: memref<4xi32, #tpu.memory_space<smem>>) -> (i32, i32, i32) {
    %c0_i32 = arith.constant 0 : i32
    %c0_i32_0 = arith.constant 0 : i32
    return %arg0, %arg1, %c0_i32 : i32, i32, i32
  }
  func.func @transform_2(%arg0: i32, %arg1: i32, %arg2: memref<4xi32, #tpu.memory_space<smem>>) -> (i32, i32, i32) {
    %c0_i32 = arith.constant 0 : i32
    %c0_i32_0 = arith.constant 0 : i32
    return %arg0, %arg1, %c0_i32 : i32, i32, i32
  }
  func.func @transform_3(%arg0: i32, %arg1: i32, %arg2: memref<4xi32, #tpu.memory_space<smem>>) -> (i32, i32, i32) {
    %c0_i32 = arith.constant 0 : i32
    %c0_i32_0 = arith.constant 0 : i32
    return %arg0, %arg1, %c0_i32 : i32, i32, i32
  }
}

</mosaic_0001>

<llo_original>
// kernel: tpu_custom_call.1
$region0: #{tpu_custom_call.1}
  #allocation0 [shape = 'u32[]', space=smem, size = 0x4, offset = 0x4, fixed_abs, tag = 'smem constant byte address 0x4 - core index']
  #allocation1 [shape = 'u32[72,128]{1,0:T(1,128)}', space=vmem, size = 0x9000, scoped, tag = 'internal scratch']
  #allocation2 [shape = 's32[1]{0}', space=sflag, size = 0x4, scoped, tag = 'scoped memory for tpu_custom_call.1']
  #allocation3 [shape = 'u8[512]{0}', space=smem, size = 0x200, scoped, tag = 'prefetched SMEM operand 0']
  #allocation4 [shape = 'f32[1]{0:T(128)S(6)}', space=smem, size = 0x200, scoped, tag = 'scoped memory for tpu_custom_call.1']
  %s0 = inlined_call_operand.vmem [shape: s32[4], index: 0, kind: input, shape index: {}]
  %s1 = inlined_call_operand.<no memory space> [shape: f32[1], index: 1, kind: input, shape index: {}]
  %s2 = inlined_call_operand.hbm [shape: f32[4,8,128], index: 2, kind: input, shape index: {}]
  %s3 = inlined_call_operand.hbm [shape: f32[4,8,128], index: 3, kind: input, shape index: {}]
  %s4 = inlined_call_operand.hbm [shape: f32[4,8,128], index: 4, kind: output, shape index: {}]
  %s5 = sld [smem:[#allocation0]]
  $region30: #{tpu_custom_call.1} parent=0
    _
  %s7 = ssub.s32 1, %s5
  %s8 = scalar_select 0, %s7, %s5
  %s10 = sshll.u32 %s0, 4
  %s11 = int_to_ptr.vmem [resolvable:$true] %s10
  %13 = dma.vmem_to_smem %s11, 16, [#allocation3], [#allocation2]
  %14 = sst [smem:[#allocation4]] %s1
  %16 = dma.done [#allocation2], 16
  %17 = sfence
  $region1: #{tpu_custom_call.1} parent=0
    #allocation5 [shape = 'u8[16384]{0}', space=vmem, size = 0x4000, scoped, tag = 'input window, operand 2, single buffered']
    #allocation6 [shape = 's32[1]{0}', space=sflag, size = 0x4, scoped, tag = 'scoped memory for tpu_custom_call.1']
    #allocation7 [shape = 's32[1]{0}', space=sflag, size = 0x4, scoped, tag = 'scoped memory for tpu_custom_call.1']
    #allocation8 [shape = 'u8[16384]{0}', space=vmem, size = 0x4000, scoped, tag = 'input window, operand 3, single buffered']
    #allocation9 [shape = 's32[1]{0}', space=sflag, size = 0x4, scoped, tag = 'scoped memory for tpu_custom_call.1']
    #allocation10 [shape = 'u8[16384]{0}', space=vmem, size = 0x4000, scoped, tag = 'output window, operand 0, single buffered']
    %18 = vsyncpa [#allocation6], 0
    %19 = vsyncpa [#allocation9], 0
    %20 = vsyncpa [#allocation7], 0
    // Predicated region
    $region2: #{tpu_custom_call.1} parent=1 // pred_check
      _
    $region3: #{tpu_custom_call.1} parent=1 // pred_check_branch
      %22 = sbr.rel (0) target = $region5
    $region4: #{tpu_custom_call.1} parent=1 // pred_region
      _
    $region5: #{tpu_custom_call.1} parent=1 // pred_fallthru
      _
    // Predicated region
    $region6: #{tpu_custom_call.1} parent=1 // pred_check
      _
    $region7: #{tpu_custom_call.1} parent=1 // pred_check_branch
      %24 = sbr.rel (0) target = $region9
    $region8: #{tpu_custom_call.1} parent=1 // pred_region
      %26 = vsyncadd [#allocation6], 0
      %s27 = sshll.u32 %s2, 4
      %s28 = int_to_ptr.hbm [resolvable:$true] %s27
      %s29 = sshll.u32 [#allocation5], 4
      %s30 = int_to_ptr.vmem [resolvable:$true] %s29
      %35 = dma.hbm_to_vmem [thread:$0]  %s28, 512, %s30, [#allocation6], 128, 128, 8
    $region9: #{tpu_custom_call.1} parent=1 // pred_fallthru
      _
    // Predicated region
    $region10: #{tpu_custom_call.1} parent=1 // pred_check
      _
    $region11: #{tpu_custom_call.1} parent=1 // pred_check_branch
      %37 = sbr.rel (0) target = $region13
    $region12: #{tpu_custom_call.1} parent=1 // pred_region
      %39 = vsyncadd [#allocation9], 0
      %s40 = sshll.u32 %s3, 4
      %s41 = int_to_ptr.hbm [resolvable:$true] %s40
      %s42 = sshll.u32 [#allocation8], 4
      %s43 = int_to_ptr.vmem [resolvable:$true] %s42
      %48 = dma.hbm_to_vmem [thread:$0]  %s41, 512, %s43, [#allocation9], 128, 128, 8
    $region13: #{tpu_custom_call.1} parent=1 // pred_fallthru
      _
    // Predicated region
    $region14: #{tpu_custom_call.1} parent=1 // pred_check
      _
    $region15: #{tpu_custom_call.1} parent=1 // pred_check_branch
      %50 = sbr.rel (0) target = $region17
    $region16: #{tpu_custom_call.1} parent=1 // pred_region
      %52 = dma.done [#allocation6], 512
    $region17: #{tpu_custom_call.1} parent=1 // pred_fallthru
      _
    // Predicated region
    $region18: #{tpu_custom_call.1} parent=1 // pred_check
      _
    $region19: #{tpu_custom_call.1} parent=1 // pred_check_branch
      %54 = sbr.rel (0) target = $region21
    $region20: #{tpu_custom_call.1} parent=1 // pred_region
      %56 = dma.done [#allocation9], 512
    $region21: #{tpu_custom_call.1} parent=1 // pred_fallthru
      _
    %s57 = sld [smem:[#allocation4]]
    %v58 = vld [vmem:[#allocation5] sm:$0xff]
    %v59 = vld [vmem:[#allocation5 + $0x8] sm:$0xff]
    %v60 = vld [vmem:[#allocation5 + $0x10] sm:$0xff]
    %v61 = vld [vmem:[#allocation5 + $0x18] sm:$0xff]
    %v62 = vld [vmem:[#allocation8] sm:$0xff]
    %v63 = vld [vmem:[#allocation8 + $0x8] sm:$0xff]
    %v64 = vld [vmem:[#allocation8 + $0x10] sm:$0xff]
    %v65 = vld [vmem:[#allocation8 + $0x18] sm:$0xff]
    %v66 = vstv %s57
    %v67 = vmul.f32 %v66, %v58
    %v68 = vmul.f32 %v66, %v59
    %v69 = vmul.f32 %v66, %v60
    %v70 = vmul.f32 %v66, %v61
    %s71 = ssub.f32 1.0, %s57
    %v72 = vstv %s71
    %v73 = vmul.f32 %v72, %v62
    %v74 = vmul.f32 %v72, %v63
    %v75 = vmul.f32 %v72, %v64
    %v76 = vmul.f32 %v72, %v65
    %v77 = vadd.f32 %v67, %v73
    %v78 = vadd.f32 %v68, %v74
    %v79 = vadd.f32 %v69, %v75
    %v80 = vadd.f32 %v70, %v76
    %81 = vst [vmem:[#allocation10] sm:$0xff] %v77
    %82 = vst [vmem:[#allocation10 + $0x8] sm:$0xff] %v78
    %83 = vst [vmem:[#allocation10 + $0x10] sm:$0xff] %v79
    %84 = vst [vmem:[#allocation10 + $0x18] sm:$0xff] %v80
    // Predicated region
    $region22: #{tpu_custom_call.1} parent=1 // pred_check
      _
    $region23: #{tpu_custom_call.1} parent=1 // pred_check_branch
      %86 = sbr.rel (0) target = $region25
    $region24: #{tpu_custom_call.1} parent=1 // pred_region
      %88 = vsyncadd [#allocation7], 0
      %s89 = sshll.u32 [#allocation10], 4
      %s90 = int_to_ptr.vmem [resolvable:$true] %s89
      %s91 = sshll.u32 %s4, 4
      %s92 = int_to_ptr.hbm [resolvable:$true] %s91
      %97 = dma.vmem_to_hbm [thread:$0]  %s90, 512, %s92, [#allocation7], 128, 128, 8
    $region25: #{tpu_custom_call.1} parent=1 // pred_fallthru
      _
    // Predicated region
    $region26: #{tpu_custom_call.1} parent=1 // pred_check
      _
    $region27: #{tpu_custom_call.1} parent=1 // pred_check_branch
      %99 = sbr.rel (0) target = $region29
    $region28: #{tpu_custom_call.1} parent=1 // pred_region
      %101 = dma.done [#allocation7], 512
    $region29: #{tpu_custom_call.1} parent=1 // pred_fallthru
      _
    %102 = vsyncpa [#allocation6], 1
    %103 = vsyncpa [#allocation9], 1
    %104 = vsyncpa [#allocation7], 1

</llo_original>
